<compile_context>
chip_gen: v6e
topology: v6e:2x2x1
jax: 0.10.0
libtpu: 0.0.40
codegen_flags: <defaults>
</compile_context>

<pallas_src>
import functools

import jax
import jax.numpy as jnp
from jax import lax
from jax.experimental import pallas as pl
from jax.experimental.pallas import tpu as pltpu

_LANE = 128
_SUBLANE = 8


def _round_up(x, m):
    return -(-x // m) * m


def _vmem_capacity_bytes():
    try:
        return int(pltpu.get_tpu_info().vmem_capacity_bytes)
    except Exception:
        return 64 * 1024 * 1024  # conservative default (v7x per-core VMEM)


def _choose_tile_m(n_rows, d_model, hidden, l_pad):
    """Pick the row-tile so double-buffered blocks + resident weights fit VMEM."""
    budget = int(0.45 * _vmem_capacity_bytes())
    # resident bf16 weights + f32 biases
    resident = 2 * d_model * hidden + 2 * hidden * l_pad + 4 * (hidden + l_pad)
    # per-row bytes: double-buffered (bf16 x, f32 padded scores, f32 loss, i32 label)
    # plus in-kernel temporaries (f32 h & s, bf16 casts)
    per_row = (2 * (2 * d_model + 4 * l_pad + 4 + 4)
               + 4 * hidden + 2 * hidden + 4 * l_pad + 2 * l_pad + 2 * d_model)
    tile = (budget - resident) // max(per_row, 1)
    tile = max(256, (int(tile) // 256) * 256)     # multiple of 256 rows fills the MXU
    tile = min(tile, 2048)                        # diminishing returns past ~2k rows
    tile = min(tile, _round_up(n_rows, _SUBLANE))  # don't over-tile tiny inputs
    return max(_SUBLANE, (tile // _SUBLANE) * _SUBLANE)


# ----------------------------------------------------------------------------
# PredLayer4Classification head (Linear -> Tanh -> Dropout(id) -> Linear + CE)
# ----------------------------------------------------------------------------
def _pred_layer_kernel(x_ref, w1_ref, b1_ref, w2_ref, b2_ref, y_ref,
                       scores_ref, loss_ref, *, n_labels, n_valid_rows, tile_m):
    # x_ref: (TILE_M, D) bf16 | w1_ref: (D, H) bf16 | b1_ref: (1, H) f32
    # w2_ref: (H, L_pad) bf16 | b2_ref: (1, L_pad) f32 | y_ref: (TILE_M, 1) i32
    # scores_ref: (TILE_M, L_pad) f32 | loss_ref: (TILE_M, 1) f32
    x = x_ref[...]
    h = jnp.tanh(
        jnp.dot(x, w1_ref[...], preferred_element_type=jnp.float32)
        + b1_ref[...])                                           # (TILE_M, H) f32
    # TODO(synk): nn.Dropout between Tanh and the classifier Linear is a no-op here
    # (dropout = 0 / eval mode).
    s = (jnp.dot(h.astype(jnp.bfloat16), w2_ref[...],
                 preferred_element_type=jnp.float32)
         + b2_ref[...])                                          # (TILE_M, L_pad) f32
    scores_ref[...] = s                                          # lane-dense 128-wide store

    # F.cross_entropy(scores, y), restricted to the real n_labels columns.
    col = lax.broadcasted_iota(jnp.int32, s.shape, 1)
    s_m = jnp.where(col < n_labels, s, jnp.float32(-1e30))       # mask padded logits
    m = jnp.max(s_m, axis=-1, keepdims=True)
    lse = jnp.log(jnp.sum(jnp.exp(s_m - m), axis=-1, keepdims=True)) + m
    picked = jnp.sum(jnp.where(col == y_ref[...], s, jnp.float32(0.0)),
                     axis=-1, keepdims=True)                     # s[i, y_i]
    per_row = lse - picked                                       # (TILE_M, 1)

    # Mask rows that only exist because N was rounded up to a multiple of TILE_M.
    row = (pl.program_id(0) * tile_m
           + lax.broadcasted_iota(jnp.int32, per_row.shape, 0))
    loss_ref[...] = jnp.where(row < n_valid_rows, per_row, jnp.float32(0.0))


def prepare_pred_layer_params(w1, b1, w2, b2):
    """One-time parameter prep (PyTorch Linear layout in, kernel layout out).

    w1: (hidden, d_model), b1: (hidden,), w2: (n_labels, hidden), b2: (n_labels,)
    Returns pre-transposed bf16 weights, f32 biases, with the classifier padded to a
    lane-dense 128-wide output. Do this once at parameter setup, not per forward call.
    """
    hidden, d_model = w1.shape
    n_labels = w2.shape[0]
    l_pad = _round_up(n_labels, _LANE)

    w1t = jnp.asarray(w1, jnp.float32).T.astype(jnp.bfloat16)            # (D, H)
    b1r = jnp.asarray(b1, jnp.float32).reshape(1, hidden)                # (1, H)
    w2t = (jnp.zeros((hidden, l_pad), jnp.float32)
           .at[:, :n_labels].set(jnp.asarray(w2, jnp.float32).T)
           .astype(jnp.bfloat16))                                        # (H, L_pad)
    b2r = (jnp.zeros((1, l_pad), jnp.float32)
           .at[0, :n_labels].set(jnp.asarray(b2, jnp.float32)))          # (1, L_pad)
    return dict(w1t=w1t, b1=b1r, w2t=w2t, b2=b2r, n_labels=n_labels)


def pred_layer_forward(x, y, params, tile_m=None):
    """x: (N, d_model) features, y: (N,) int labels. Returns (scores (N, L), loss ())."""
    n, d_model = x.shape
    w1t, b1 = params["w1t"], params["b1"]
    w2t, b2 = params["w2t"], params["b2"]
    n_labels = params["n_labels"]
    hidden = w1t.shape[1]
    l_pad = w2t.shape[1]

    if tile_m is None:
        tile_m = _choose_tile_m(n, d_model, hidden, l_pad)
    n_pad = _round_up(n, tile_m)

    x_bf = jnp.asarray(x).astype(jnp.bfloat16)
    y_i = jnp.asarray(y, jnp.int32)
    if n_pad != n:
        x_bf = jnp.pad(x_bf, ((0, n_pad - n), (0, 0)))
        y_i = jnp.pad(y_i, (0, n_pad - n))
    y2d = y_i.reshape(n_pad, 1)

    grid = (n_pad // tile_m,)
    kernel = functools.partial(_pred_layer_kernel, n_labels=n_labels,
                               n_valid_rows=n, tile_m=tile_m)

    bytes_accessed = (2 * n_pad * d_model + 4 * n_pad * l_pad + 8 * n_pad
                      + 2 * d_model * hidden + 2 * hidden * l_pad
                      + 4 * (hidden + l_pad))
    cost = pl.CostEstimate(
        flops=2 * n_pad * (d_model * hidden + hidden * l_pad) + 10 * n_pad * l_pad,
        transcendentals=n_pad * (hidden + l_pad),
        bytes_accessed=bytes_accessed)

    scores_pad, loss_rows = pl.pallas_call(
        kernel,
        out_shape=(jax.ShapeDtypeStruct((n_pad, l_pad), jnp.float32),
                   jax.ShapeDtypeStruct((n_pad, 1), jnp.float32)),
        grid=grid,
        in_specs=[
            pl.BlockSpec((tile_m, d_model), lambda i: (i, 0)),   # x (pipelined)
            pl.BlockSpec((d_model, hidden), lambda i: (0, 0)),   # W1 (resident)
            pl.BlockSpec((1, hidden), lambda i: (0, 0)),         # b1 (resident)
            pl.BlockSpec((hidden, l_pad), lambda i: (0, 0)),     # W2 padded (resident)
            pl.BlockSpec((1, l_pad), lambda i: (0, 0)),          # b2 padded (resident)
            pl.BlockSpec((tile_m, 1), lambda i: (i, 0)),         # labels
        ],
        out_specs=(
            pl.BlockSpec((tile_m, l_pad), lambda i: (i, 0)),     # lane-dense scores
            pl.BlockSpec((tile_m, 1), lambda i: (i, 0)),         # per-row CE loss
        ),
        compiler_params=pltpu.CompilerParams(
            dimension_semantics=("parallel",),
            vmem_limit_bytes=int(0.75 * _vmem_capacity_bytes())),
        cost_estimate=cost,
    )(x_bf, w1t, b1, w2t, b2, y2d)

    scores = scores_pad[:n, :n_labels]
    loss = jnp.sum(loss_rows) * (1.0 / n)    # mean reduction (padded rows contribute 0)
    return scores, loss


# ----------------------------------------------------------------------------
# CNN1dClassifier frontend (embedding + Conv1d/ReLU/global-max-pool + concat)
# ----------------------------------------------------------------------------
def cnn1d_features(x_ids, emb_table, conv_params):
    # TODO(synk): embedding gather + the small Conv1d/ReLU/max-pool frontend stays in
    # plain JAX; the Pallas kernel above covers the PredLayer4Classification head.
    emb = jnp.take(emb_table, x_ids, axis=0)                 # (B, S, E); dropout = id
    pooled = []
    for w_c, b_c in conv_params:                             # w_c: (F, E, fs), b_c: (F,)
        fs = w_c.shape[-1]
        t_out = emb.shape[1] - fs + 1
        acc = jnp.zeros(emb.shape[:1] + (t_out, w_c.shape[0]), jnp.float32)
        for k in range(fs):
            acc = acc + jnp.einsum("bte,fe->btf", emb[:, k:k + t_out, :], w_c[:, :, k])
        conved = jax.nn.relu(acc + b_c[None, None, :])       # (B, T, F)
        pooled.append(jnp.max(conved, axis=1))               # global max-pool over time
    return jnp.concatenate(pooled, axis=-1)                  # (B, n_sizes * F)


def cnn1d_classifier_forward(x_ids, y, emb_table, conv_params, pred_params):
    feats = cnn1d_features(x_ids, emb_table, conv_params)
    return pred_layer_forward(feats, y, pred_params)


# ----------------------------------------------------------------------------
# Reference (matches the kernel's bf16-rounded MXU operands, rest in f32)
# ----------------------------------------------------------------------------
def _reference_pred_layer(feat, y, params):
    n_labels = params["n_labels"]
    w1t = params["w1t"].astype(jnp.float32)
    w2t = params["w2t"].astype(jnp.float32)[:, :n_labels]
    b1 = params["b1"][0]
    b2 = params["b2"][0, :n_labels]
    xq = feat.astype(jnp.bfloat16).astype(jnp.float32)
    h = jnp.tanh(jnp.dot(xq, w1t, precision=lax.Precision.HIGHEST) + b1)
    hq = h.astype(jnp.bfloat16).astype(jnp.float32)
    s = jnp.dot(hq, w2t, precision=lax.Precision.HIGHEST) + b2
    lse = jax.nn.logsumexp(s, axis=-1)
    picked = jnp.take_along_axis(s, y[:, None], axis=-1)[:, 0]
    return s, jnp.mean(lse - picked)


if __name__ == "__main__":
    # Small shapes consistent with the module: token ids (batch, seq), emb_dim=32,
    # n_filters=16, filter_sizes=(2,3,4) -> d_model=48, hidden_dim=32, n_labels=8.
    batch, seq, vocab = 8, 16, 97
    emb_dim, n_filters = 32, 16
    filter_sizes = (2, 3, 4)
    hidden_dim, n_labels = 32, 8
    d_model = n_filters * len(filter_sizes)

    keys = jax.random.split(jax.random.PRNGKey(0), 16)
    x_ids = jax.random.randint(keys[0], (batch, seq), 0, vocab, dtype=jnp.int32)
    y = jax.random.randint(keys[1], (batch,), 0, n_labels, dtype=jnp.int32)
    emb_table = 0.5 * jax.random.normal(keys[2], (vocab, emb_dim), jnp.float32)

    conv_params = []
    for i, fs in enumerate(filter_sizes):
        w_c = 0.2 * jax.random.normal(keys[3 + 2 * i], (n_filters, emb_dim, fs), jnp.float32)
        b_c = 0.1 * jax.random.normal(keys[4 + 2 * i], (n_filters,), jnp.float32)
        conv_params.append((w_c, b_c))

    w1 = 0.2 * jax.random.normal(keys[10], (hidden_dim, d_model), jnp.float32)
    b1 = 0.1 * jax.random.normal(keys[11], (hidden_dim,), jnp.float32)
    w2 = 0.5 * jax.random.normal(keys[12], (n_labels, hidden_dim), jnp.float32)
    b2 = 0.1 * jax.random.normal(keys[13], (n_labels,), jnp.float32)

    pred_params = prepare_pred_layer_params(w1, b1, w2, b2)   # one-time prep

    feats = cnn1d_features(x_ids, emb_table, conv_params)     # (batch, d_model)
    fwd = jax.jit(lambda f, labels: pred_layer_forward(f, labels, pred_params))
    scores, loss = fwd(feats, y)
    jax.block_until_ready((scores, loss))

    ref_scores, ref_loss = _reference_pred_layer(feats, y, pred_params)
    assert scores.shape == (batch, n_labels)
    assert jnp.allclose(scores, ref_scores, atol=5e-3, rtol=5e-3), "scores mismatch"
    assert jnp.allclose(loss, ref_loss, atol=5e-3, rtol=5e-3), "loss mismatch"

    print("KERNEL_OK")
</pallas_src>

<mosaic_0001>
module attributes {stable_mosaic.version = 11 : i64} {
  func.func @_pred_layer_kernel(%arg0: i32, %arg1: memref<8x48xbf16, #tpu.memory_space<vmem>>, %arg2: memref<48x32xbf16, #tpu.memory_space<vmem>>, %arg3: memref<1x32xf32, #tpu.memory_space<vmem>>, %arg4: memref<32x128xbf16, #tpu.memory_space<vmem>>, %arg5: memref<1x128xf32, #tpu.memory_space<vmem>>, %arg6: memref<8x1xi32, #tpu.memory_space<vmem>>, %arg7: memref<8x128xf32, #tpu.memory_space<vmem>>, %arg8: memref<8x1xf32, #tpu.memory_space<vmem>>) attributes {dimension_semantics = [#tpu.dimension_semantics<parallel>], iteration_bounds = array<i64: 1>, scalar_prefetch = 0 : i64, scratch_operands = 0 : i64, tpu.core_type = #tpu.core_type<tc>, window_params = [{transform_indices = @transform_0, window_bounds = array<i64: 8, 48>}, {pipeline_mode = #tpu.pipeline_mode<synchronous>, transform_indices = @transform_1, window_bounds = array<i64: 48, 32>}, {pipeline_mode = #tpu.pipeline_mode<synchronous>, transform_indices = @transform_2, window_bounds = array<i64: 1, 32>}, {pipeline_mode = #tpu.pipeline_mode<synchronous>, transform_indices = @transform_3, window_bounds = array<i64: 32, 128>}, {pipeline_mode = #tpu.pipeline_mode<synchronous>, transform_indices = @transform_4, window_bounds = array<i64: 1, 128>}, {transform_indices = @transform_5, window_bounds = array<i64: 8, 1>}, {transform_indices = @transform_6, window_bounds = array<i64: 8, 128>}, {transform_indices = @transform_7, window_bounds = array<i64: 8, 1>}]} {
    %c0 = arith.constant 0 : index
    %c0_0 = arith.constant 0 : index
    %0 = vector.load %arg1[%c0, %c0_0] : memref<8x48xbf16, #tpu.memory_space<vmem>>, vector<8x48xbf16>
    %c0_1 = arith.constant 0 : index
    %c0_2 = arith.constant 0 : index
    %1 = vector.load %arg2[%c0_1, %c0_2] : memref<48x32xbf16, #tpu.memory_space<vmem>>, vector<48x32xbf16>
    %cst = arith.constant dense<0.000000e+00> : vector<8x32xf32>
    %2 = tpu.matmul %0, %1, %cst {dimension_numbers = #tpu.dot_dimension_numbers<[1], [0], [0], [1], [0, 0, 1, 1], [], []>} : vector<8x48xbf16>, vector<48x32xbf16>, vector<8x32xf32> -> vector<8x32xf32>
    %c0_3 = arith.constant 0 : index
    %c0_4 = arith.constant 0 : index
    %3 = vector.load %arg3[%c0_3, %c0_4] : memref<1x32xf32, #tpu.memory_space<vmem>>, vector<1x32xf32>
    %4 = vector.broadcast %3 : vector<1x32xf32> to vector<8x32xf32>
    %5 = arith.addf %2, %4 : vector<8x32xf32>
    %6 = math.tanh %5 : vector<8x32xf32>
    %7 = arith.truncf %6 : vector<8x32xf32> to vector<8x32xbf16>
    %c0_5 = arith.constant 0 : index
    %c0_6 = arith.constant 0 : index
    %8 = vector.load %arg4[%c0_5, %c0_6] : memref<32x128xbf16, #tpu.memory_space<vmem>>, vector<32x128xbf16>
    %cst_7 = arith.constant dense<0.000000e+00> : vector<8x128xf32>
    %9 = tpu.matmul %7, %8, %cst_7 {dimension_numbers = #tpu.dot_dimension_numbers<[1], [0], [0], [1], [0, 0, 1, 1], [], []>} : vector<8x32xbf16>, vector<32x128xbf16>, vector<8x128xf32> -> vector<8x128xf32>
    %c0_8 = arith.constant 0 : index
    %c0_9 = arith.constant 0 : index
    %10 = vector.load %arg5[%c0_8, %c0_9] : memref<1x128xf32, #tpu.memory_space<vmem>>, vector<1x128xf32>
    %11 = vector.broadcast %10 : vector<1x128xf32> to vector<8x128xf32>
    %12 = arith.addf %9, %11 : vector<8x128xf32>
    %c0_10 = arith.constant 0 : index
    %c0_11 = arith.constant 0 : index
    %13 = vector.load %arg7[%c0_10, %c0_11] : memref<8x128xf32, #tpu.memory_space<vmem>>, vector<8x128xf32>
    tpu.vector_store %arg7[%c0_10, %c0_11], %12 {strides = array<i32>} : memref<8x128xf32, #tpu.memory_space<vmem>>, vector<8x128xf32>,
    %14 = tpu.iota {dimensions = array<i32: 1>} : vector<8x128xi32>
    %c8_i32 = arith.constant 8 : i32
    %15 = vector.broadcast %c8_i32 : i32 to vector<8x128xi32>
    %16 = arith.cmpi slt, %14, %15 : vector<8x128xi32>
    %cst_12 = arith.constant -1.000000e+30 : f32
    %17 = vector.broadcast %cst_12 : f32 to vector<8x128xf32>
    %18 = arith.select %16, %12, %17 : vector<8x128xi1>, vector<8x128xf32>
    %cst_13 = arith.constant dense<0xFF800000> : vector<8xf32>
    %19 = vector.multi_reduction <maximumf>, %18, %cst_13 [1] : vector<8x128xf32> to vector<8xf32>
    %20 = vector.shape_cast %19 : vector<8xf32> to vector<8x1xf32>
    %21 = vector.broadcast %20 : vector<8x1xf32> to vector<8x128xf32>
    %22 = arith.subf %18, %21 : vector<8x128xf32>
    %23 = math.exp %22 : vector<8x128xf32>
    %cst_14 = arith.constant dense<0.000000e+00> : vector<8xf32>
    %24 = vector.multi_reduction <add>, %23, %cst_14 [1] : vector<8x128xf32> to vector<8xf32>
    %25 = vector.shape_cast %24 : vector<8xf32> to vector<8x1xf32>
    %26 = math.log %25 : vector<8x1xf32>
    %27 = arith.addf %26, %20 : vector<8x1xf32>
    %c0_15 = arith.constant 0 : index
    %c0_16 = arith.constant 0 : index
    %28 = vector.load %arg6[%c0_15, %c0_16] : memref<8x1xi32, #tpu.memory_space<vmem>>, vector<8x1xi32>
    %29 = vector.broadcast %28 : vector<8x1xi32> to vector<8x128xi32>
    %30 = arith.cmpi eq, %14, %29 : vector<8x128xi32>
    %cst_17 = arith.constant 0.000000e+00 : f32
    %31 = vector.broadcast %cst_17 : f32 to vector<8x128xf32>
    %32 = arith.select %30, %12, %31 : vector<8x128xi1>, vector<8x128xf32>
    %cst_18 = arith.constant dense<0.000000e+00> : vector<8xf32>
    %33 = vector.multi_reduction <add>, %32, %cst_18 [1] : vector<8x128xf32> to vector<8xf32>
    %34 = vector.shape_cast %33 : vector<8xf32> to vector<8x1xf32>
    %35 = arith.subf %27, %34 : vector<8x1xf32>
    %c8_i32_19 = arith.constant 8 : i32
    %36 = arith.muli %arg0, %c8_i32_19 : i32
    %37 = tpu.iota {dimensions = array<i32: 0>} : vector<8x1xi32>
    %38 = vector.broadcast %36 : i32 to vector<8x1xi32>
    %39 = arith.addi %38, %37 : vector<8x1xi32>
    %c8_i32_20 = arith.constant 8 : i32
    %40 = vector.broadcast %c8_i32_20 : i32 to vector<8x1xi32>
    %41 = arith.cmpi slt, %39, %40 : vector<8x1xi32>
    %cst_21 = arith.constant 0.000000e+00 : f32
    %42 = vector.broadcast %cst_21 : f32 to vector<8x1xf32>
    %43 = arith.select %41, %35, %42 : vector<8x1xi1>, vector<8x1xf32>
    %c0_22 = arith.constant 0 : index
    %c0_23 = arith.constant 0 : index
    %44 = vector.load %arg8[%c0_22, %c0_23] : memref<8x1xf32, #tpu.memory_space<vmem>>, vector<8x1xf32>
    tpu.vector_store %arg8[%c0_22, %c0_23], %43 {strides = array<i32>} : memref<8x1xf32, #tpu.memory_space<vmem>>, vector<8x1xf32>,
    return
  }
  func.func @transform_0(%arg0: i32) -> (i32, i32) {
    %c0_i32 = arith.constant 0 : i32
    %c0_i32_0 = arith.constant 0 : i32
    return %arg0, %c0_i32 : i32, i32
  }
  func.func @transform_1(%arg0: i32) -> (i32, i32) {
    %c0_i32 = arith.constant 0 : i32
    %c0_i32_0 = arith.constant 0 : i32
    %c0_i32_1 = arith.constant 0 : i32
    return %c0_i32, %c0_i32_0 : i32, i32
  }
  func.func @transform_2(%arg0: i32) -> (i32, i32) {
    %c0_i32 = arith.constant 0 : i32
    %c0_i32_0 = arith.constant 0 : i32
    %c0_i32_1 = arith.constant 0 : i32
    return %c0_i32, %c0_i32_0 : i32, i32
  }
  func.func @transform_3(%arg0: i32) -> (i32, i32) {
    %c0_i32 = arith.constant 0 : i32
    %c0_i32_0 = arith.constant 0 : i32
    %c0_i32_1 = arith.constant 0 : i32
    return %c0_i32, %c0_i32_0 : i32, i32
  }
  func.func @transform_4(%arg0: i32) -> (i32, i32) {
    %c0_i32 = arith.constant 0 : i32
    %c0_i32_0 = arith.constant 0 : i32
    %c0_i32_1 = arith.constant 0 : i32
    return %c0_i32, %c0_i32_0 : i32, i32
  }
  func.func @transform_5(%arg0: i32) -> (i32, i32) {
    %c0_i32 = arith.constant 0 : i32
    %c0_i32_0 = arith.constant 0 : i32
    return %arg0, %c0_i32 : i32, i32
  }
  func.func @transform_6(%arg0: i32) -> (i32, i32) {
    %c0_i32 = arith.constant 0 : i32
    %c0_i32_0 = arith.constant 0 : i32
    return %arg0, %c0_i32 : i32, i32
  }
  func.func @transform_7(%arg0: i32) -> (i32, i32) {
    %c0_i32 = arith.constant 0 : i32
    %c0_i32_0 = arith.constant 0 : i32
    return %arg0, %c0_i32 : i32, i32
  }
}

</mosaic_0001>

<llo_original>
// kernel: _lambda_.1
$region0: #{_lambda_.1}
  #allocation0 [shape = 'u32[]', space=smem, size = 0x4, offset = 0x4, fixed_abs, tag = 'smem constant byte address 0x4 - core index']
  #allocation1 [shape = 'u32[144,128]{1,0:T(1,128)}', space=vmem, size = 0x12000, scoped, tag = 'internal scratch']
  %s0 = inlined_call_operand.vmem [shape: bf16[8,48], index: 0, kind: input, shape index: {}]
  %s1 = inlined_call_operand.vmem [shape: bf16[48,32], index: 1, kind: input, shape index: {}]
  %s2 = inlined_call_operand.vmem [shape: f32[1,32], index: 2, kind: input, shape index: {}]
  %s3 = inlined_call_operand.hbm [shape: bf16[32,128], index: 3, kind: input, shape index: {}]
  %s4 = inlined_call_operand.vmem [shape: f32[1,128], index: 4, kind: input, shape index: {}]
  %s5 = inlined_call_operand.vmem [shape: s32[8,1], index: 5, kind: input, shape index: {}]
  %s6 = inlined_call_operand.hbm [shape: f32[8,128], index: 6, kind: output, shape index: {0}]
  %s7 = inlined_call_operand.vmem [shape: f32[8,1], index: 7, kind: output, shape index: {1}]
  %8 = xla_tuple %s6, %s7
  %s9 = sld [smem:[#allocation0]]
  $region46: #{_lambda_.1} parent=0
    _
  %s11 = ssub.s32 1, %s9
  %s12 = scalar_select 0, %s11, %s9
  $region1: #{_lambda_.1} parent=0
    #allocation2 [shape = 'u8[8192]{0}', space=vmem, size = 0x2000, scoped, tag = 'input window, operand 3, single buffered']
    #allocation3 [shape = 's32[1]{0}', space=sflag, size = 0x4, scoped, tag = 'scoped memory for _lambda_.1']
    #allocation4 [shape = 's32[1]{0}', space=sflag, size = 0x4, scoped, tag = 'scoped memory for _lambda_.1']
    #allocation5 [shape = 'u8[4096]{0}', space=vmem, size = 0x1000, scoped, tag = 'output window, operand 0, single buffered']
    %13 = vsyncpa [#allocation3], 0
    %14 = vsyncpa [#allocation4], 0
    // Predicated region
    $region2: #{_lambda_.1} parent=1 // pred_check
      _
    $region3: #{_lambda_.1} parent=1 // pred_check_branch
      %16 = sbr.rel (0) target = $region5
    $region4: #{_lambda_.1} parent=1 // pred_region
      _
    $region5: #{_lambda_.1} parent=1 // pred_fallthru
      _
    // Predicated region
    $region6: #{_lambda_.1} parent=1 // pred_check
      _
    $region7: #{_lambda_.1} parent=1 // pred_check_branch
      %18 = sbr.rel (0) target = $region9
    $region8: #{_lambda_.1} parent=1 // pred_region
      _
    $region9: #{_lambda_.1} parent=1 // pred_fallthru
      _
    // Predicated region
    $region10: #{_lambda_.1} parent=1 // pred_check
      _
    $region11: #{_lambda_.1} parent=1 // pred_check_branch
      %20 = sbr.rel (0) target = $region13
    $region12: #{_lambda_.1} parent=1 // pred_region
      _
    $region13: #{_lambda_.1} parent=1 // pred_fallthru
      _
    // Predicated region
    $region14: #{_lambda_.1} parent=1 // pred_check
      _
    $region15: #{_lambda_.1} parent=1 // pred_check_branch
      %22 = sbr.rel (0) target = $region17
    $region16: #{_lambda_.1} parent=1 // pred_region
      %s24 = ssub.s32 256, 256
      %25 = vsyncadd [#allocation3], %s24
      %s26 = sshll.u32 [#allocation2], 4
      %s27 = int_to_ptr.vmem [resolvable:$true] %s26
      %32 = dma.hbm_to_vmem [thread:$0]  %s3, 256, %s27, [#allocation3], 64, 64, 4
    $region17: #{_lambda_.1} parent=1 // pred_fallthru
      _
    // Predicated region
    $region18: #{_lambda_.1} parent=1 // pred_check
      _
    $region19: #{_lambda_.1} parent=1 // pred_check_branch
      %34 = sbr.rel (0) target = $region21
    $region20: #{_lambda_.1} parent=1 // pred_region
      _
    $region21: #{_lambda_.1} parent=1 // pred_fallthru
      _
    // Predicated region
    $region22: #{_lambda_.1} parent=1 // pred_check
      _
    $region23: #{_lambda_.1} parent=1 // pred_check_branch
      %36 = sbr.rel (0) target = $region25
    $region24: #{_lambda_.1} parent=1 // pred_region
      _
    $region25: #{_lambda_.1} parent=1 // pred_fallthru
      _
    // Predicated region
    $region26: #{_lambda_.1} parent=1 // pred_check
      _
    $region27: #{_lambda_.1} parent=1 // pred_check_branch
      %38 = sbr.rel (0) target = $region29
    $region28: #{_lambda_.1} parent=1 // pred_region
      %39 = dma.done [#allocation3], 256
    $region29: #{_lambda_.1} parent=1 // pred_fallthru
      _
    %v41 = vld [vmem:[%s0] sm:$0xf]
    %v42 = vld [vmem:[%s1] sm:$0xf]
    %v43 = vld [vmem:[%s1 + $0x4] sm:$0xf]
    %v44 = vld [vmem:[%s1 + $0x8] sm:$0xf]
    %v45 = vld [vmem:[%s1 + $0xc] sm:$0xf]
    %v46 = vld [vmem:[%s1 + $0x10] sm:$0xf]
    %v47 = vld [vmem:[%s1 + $0x14] sm:$0xf]
    %v48 = vld [vmem:[%s2] sm:$0x1]
    %v50 = vlaneseq
    %v51 = vshrl.u32 %v50, 7
    %v52 = vsub.s32 0, %v51
    %v53 = vrot.slane %v48, %v52
    %v61 = vunpack.c.l.b16 %v42
    %v62 = vunpack.c.l.b16 %v43
    %v63 = vunpack.c.l.b16 %v44
    %v64 = vunpack.c.l.b16 %v45
    %v65 = vunpack.c.l.b16 %v46
    %v66 = vunpack.c.l.b16 %v47
    %v67 = vpack.c.b16 %v62, %v61
    %v68 = vpack.c.b16 %v64, %v63
    %v69 = vpack.c.b16 %v66, %v65
    %vm73 = vcmask 392192
    %v75 = vsel %vm73, %v41, 0
    %77 = vmatprep.subr.bf16.mxu0 0
    %78 = vmatpush1.bf16.msra.mxu0 0
    %79 = vmatprep.subr.bf16.mxu0 0
    %80 = vmatpush1.bf16.msra.mxu0 0
    %81 = vmatprep.subr.bf16.mxu0 0
    %82 = vmatpush1.bf16.msra.mxu0 0
    %83 = vmatprep.subr.bf16.mxu0 0
    %84 = vmatpush1.bf16.msra.mxu0 0
    %85 = vmatprep.subr.bf16.mxu0 0
    %86 = vmatpush1.bf16.msra.mxu0 0
    %87 = vmatprep.subr.bf16.mxu0 0
    %88 = vmatpush1.bf16.msra.mxu0 %v69
    %89 = vmatprep.subr.bf16.mxu0 0
    %90 = vmatpush1.bf16.msra.mxu0 %v68
    %91 = vmatprep.subr.bf16.mxu0 0
    %92 = vmatpush1.bf16.msra.mxu0 %v67
    %93 = vmatprep.subr.bf16.mxu0 0
    %94 = vmatpush2.bf16.msra.mxu0 0
    %95 = vmatprep.subr.bf16.mxu0 0
    %96 = vmatpush2.bf16.msra.mxu0 0
    %97 = vmatprep.subr.bf16.mxu0 0
    %98 = vmatpush2.bf16.msra.mxu0 0
    %99 = vmatprep.subr.bf16.mxu0 0
    %100 = vmatpush2.bf16.msra.mxu0 0
    %101 = vmatprep.subr.bf16.mxu0 0
    %102 = vmatpush2.bf16.msra.mxu0 0
    %103 = vmatprep.subr.bf16.mxu0 0
    %104 = vmatpush2.bf16.msra.mxu0 0
    %105 = vmatprep.subr.bf16.mxu0 0
    %106 = vmatpush2.bf16.msra.mxu0 0
    %107 = vmatprep.subr.bf16.mxu0 0
    %108 = vmatpush2.bf16.msra.mxu0 0
    %109 = vmatprep.mubr.bf16.mxu0 0
    %110 = vmatmul.mubr.bf16.gmra.mxu0 %v75
    %v111 = vpop.f32.mrf.mxu0
    %v112 = vadd.f32 %v53, %v111
    %v113 = vpop.f32.mrf.mxu0
    %v114 = vpop.f32.mrf.mxu0
    %v115 = vpop.f32.mrf.mxu0
    %116 = vdwg.mxu0
    %v117 = vtanh.pop %v112
    %v118 = vpack.c.bf16 %v117, %v117
    %v119 = vld [vmem:[#allocation2] sm:$0xf]
    %v120 = vld [vmem:[#allocation2 + $0x4] sm:$0xf]
    %v121 = vld [vmem:[#allocation2 + $0x8] sm:$0xf]
    %v122 = vld [vmem:[#allocation2 + $0xc] sm:$0xf]
    %v123 = vld [vmem:[%s4] sm:$0x1]
    %v125 = vlaneseq
    %v126 = vshrl.u32 %v125, 7
    %v127 = vsub.s32 0, %v126
    %v128 = vrot.slane %v123, %v127
    %v134 = vunpack.c.l.b16 %v119
    %v135 = vunpack.c.l.b16 %v120
    %v136 = vunpack.c.l.b16 %v121
    %v137 = vunpack.c.l.b16 %v122
    %v138 = vpack.c.b16 %v135, %v134
    %v139 = vpack.c.b16 %v137, %v136
    %vm142 = vcmask 261120
    %v144 = vsel %vm142, %v118, 0
    %146 = vmatprep.subr.bf16.mxu0 0
    %147 = vmatpush1.bf16.msra.mxu0 0
    %148 = vmatprep.subr.bf16.mxu0 0
    %149 = vmatpush1.bf16.msra.mxu0 0
    %150 = vmatprep.subr.bf16.mxu0 0
    %151 = vmatpush1.bf16.msra.mxu0 0
    %152 = vmatprep.subr.bf16.mxu0 0
    %153 = vmatpush1.bf16.msra.mxu0 0
    %154 = vmatprep.subr.bf16.mxu0 0
    %155 = vmatpush1.bf16.msra.mxu0 0
    %156 = vmatprep.subr.bf16.mxu0 0
    %157 = vmatpush1.bf16.msra.mxu0 0
    %158 = vmatprep.subr.bf16.mxu0 0
    %159 = vmatpush1.bf16.msra.mxu0 %v139
    %160 = vmatprep.subr.bf16.mxu0 0
    %161 = vmatpush1.bf16.msra.mxu0 %v138
    %162 = vmatprep.subr.bf16.mxu0 0
    %163 = vmatpush2.bf16.msra.mxu0 0
    %164 = vmatprep.subr.bf16.mxu0 0
    %165 = vmatpush2.bf16.msra.mxu0 0
    %166 = vmatprep.subr.bf16.mxu0 0
    %167 = vmatpush2.bf16.msra.mxu0 0
    %168 = vmatprep.subr.bf16.mxu0 0
    %169 = vmatpush2.bf16.msra.mxu0 0
    %170 = vmatprep.subr.bf16.mxu0 0
    %171 = vmatpush2.bf16.msra.mxu0 0
    %172 = vmatprep.subr.bf16.mxu0 0
    %173 = vmatpush2.bf16.msra.mxu0 0
    %174 = vmatprep.subr.bf16.mxu0 0
    %175 = vmatpush2.bf16.msra.mxu0 0
    %176 = vmatprep.subr.bf16.mxu0 0
    %177 = vmatpush2.bf16.msra.mxu0 0
    %178 = vmatprep.mubr.bf16.mxu0 0
    %179 = vmatmul.mubr.bf16.gmra.mxu0 %v144
    %v180 = vpop.f32.mrf.mxu0
    %v181 = vadd.f32 %v128, %v180
    %v182 = vpop.f32.mrf.mxu0
    %v183 = vpop.f32.mrf.mxu0
    %v184 = vpop.f32.mrf.mxu0
    %185 = vdwg.mxu0
    %186 = vst [vmem:[#allocation5] sm:$0xff] %v181
    %v187 = vlaneseq
    %v188 = vand.u32 %v187, 127
    %vm189 = vcmp.lt.s32.totalorder %v188, 8
    %v190 = vsel %vm189, %v181, -1e+30
    %191 = vmax.xlane.f32.xlu0 %v190
    %v192 = vpop.xlane.xlu0 %191
    %v193 = vsub.f32 %v190, %v192
    %v194 = vmul.f32 %v193, 1.442695
    %v195 = vpow.pop %v194
    %196 = vadd.xlane.f32.xlu0 %v195
    %v197 = vpop.xlane.xlu0 %196
    %v198 = vlog2.pop %v197
    %v199 = vmul.f32 %v198, 0.6931472
    %v200 = vadd.f32 %v199, %v192
    %v201 = vld [vmem:[%s5] sm:$0xff]
    %202 = vset.pattern.permute.xlu0 0
    %203 = vperm.xlu0 %202, %v201
    %v204 = vpop.permute.xlu0 %203
    %vm205 = vcmp.eq.s32.totalorder %v188, %v204
    %v206 = vsel %vm205, %v181, 0.0
    %207 = vadd.xlane.f32.xlu0 %v206
    %v208 = vpop.xlane.xlu0 %207
    %v209 = vsub.f32 %v200, %v208
    %s210 = smul.u32 0, 8
    %v211 = vlaneseq
    %v212 = vshrl.u32 %v211, 7
    %v213 = vstv %s210
    %v214 = vadd.s32 %v213, %v212
    %vm215 = vcmp.lt.s32.totalorder %v214, 8
    %v216 = vsel %vm215, %v209, 0.0
    %vm217 = vcmask 7168
    %218 = vst.msk [vmem:[%s7] sm:$0xff] %vm217, %v216
    // Predicated region
    $region30: #{_lambda_.1} parent=1 // pred_check
      _
    $region31: #{_lambda_.1} parent=1 // pred_check_branch
      %220 = sbr.rel (0) target = $region33
    $region32: #{_lambda_.1} parent=1 // pred_region
      %s222 = ssub.s32 128, 128
      %223 = vsyncadd [#allocation4], %s222
      %s225 = sshll.u32 [#allocation5], 4
      %s226 = int_to_ptr.vmem [resolvable:$true] %s225
      %228 = dma.vmem_to_hbm [thread:$0]  %s226, 128, %s6, [#allocation4]
    $region33: #{_lambda_.1} parent=1 // pred_fallthru
      _
    // Predicated region
    $region34: #{_lambda_.1} parent=1 // pred_check
      _
    $region35: #{_lambda_.1} parent=1 // pred_check_branch
      %230 = sbr.rel (0) target = $region37
    $region36: #{_lambda_.1} parent=1 // pred_region
      _
    $region37: #{_lambda_.1} parent=1 // pred_fallthru
      _
    // Predicated region
    $region38: #{_lambda_.1} parent=1 // pred_check
      _
    $region39: #{_lambda_.1} parent=1 // pred_check_branch
      %232 = sbr.rel (0) target = $region41
    $region40: #{_lambda_.1} parent=1 // pred_region
      %233 = dma.done [#allocation4], 128
    $region41: #{_lambda_.1} parent=1 // pred_fallthru
      _
    // Predicated region
    $region42: #{_lambda_.1} parent=1 // pred_check
      _
    $region43: #{_lambda_.1} parent=1 // pred_check_branch
      %235 = sbr.rel (0) target = $region45
    $region44: #{_lambda_.1} parent=1 // pred_region
      _
    $region45: #{_lambda_.1} parent=1 // pred_fallthru
      _
    %236 = vsyncpa [#allocation3], 1
    %237 = vsyncpa [#allocation4], 1

</llo_original>
